<compile_context>
chip_gen: v7x
topology: tpu7x:2x2x1
jax: 0.10.0
libtpu: 0.0.40
codegen_flags: <defaults>
</compile_context>

<pallas_src>
import math

import jax
import jax.numpy as jnp
import numpy as np
from jax.experimental import pallas as pl
from jax.experimental.pallas import tpu as pltpu

_MAX_TILE_BYTES = 2 * 1024 * 1024  # per-tile budget: in+out double-buffered = 8 MiB
_SUBLANE_MULTIPLE = 32             # multiple of 8 (f32) / 16 (bf16) / 32 (int8)
_MIN_GRID_STEPS = 4                # keep DMA-in / copy / DMA-out pipelined and
                                   # give both v7x TensorCores work


def _copy_kernel(x_ref, o_ref):
    # Pure pass-through on one (block_rows, lanes) tile.
    o_ref[...] = x_ref[...]


def _round_up(v: int, m: int) -> int:
    return -(-v // m) * m


def base_model_forward(x: jax.Array) -> jax.Array:
    """Pallas pass-through forward for BaseModel (abstract forward => identity)."""
    orig_shape = x.shape
    total = math.prod(orig_shape)
    itemsize = max(1, jnp.dtype(x.dtype).itemsize)

    # Widest lane-dense last dim (multiple of 128) that divides the flat size.
    lanes = next((l for l in (512, 256, 128) if total % l == 0), 128)
    padded_total = _round_up(total, lanes)  # == total on the common path
    rows = padded_total // lanes

    # Largest block that stays under the per-tile budget, capped so the grid
    # has at least ~_MIN_GRID_STEPS steps for large inputs.
    max_block_rows = max(
        _SUBLANE_MULTIPLE,
        (_MAX_TILE_BYTES // (lanes * itemsize))
        // _SUBLANE_MULTIPLE * _SUBLANE_MULTIPLE,
    )
    target_rows = _round_up(pl.cdiv(rows, _MIN_GRID_STEPS), _SUBLANE_MULTIPLE)
    block_rows = min(max_block_rows, target_rows)
    if block_rows >= rows:
        block_rows = rows  # single full-extent block (always layout-legal)
    grid = pl.cdiv(rows, block_rows)

    if padded_total != total:
        # Rare ragged case only (total % 128 != 0): keep the padded view.
        flat = jnp.pad(x.reshape(-1), (0, padded_total - total))
        x2d = flat.reshape(rows, lanes)
    else:
        # Bitcast reshape of a contiguous array: no HBM traffic.
        x2d = x.reshape(rows, lanes)

    out2d = pl.pallas_call(
        _copy_kernel,
        out_shape=jax.ShapeDtypeStruct((rows, lanes), x.dtype),
        grid_spec=pltpu.PrefetchScalarGridSpec(
            num_scalar_prefetch=0,
            grid=(grid,),
            in_specs=[pl.BlockSpec((block_rows, lanes), lambda i: (i, 0))],
            out_specs=pl.BlockSpec((block_rows, lanes), lambda i: (i, 0)),
        ),
        # Pass-through semantics: let the output live in the (donated) input buffer.
        input_output_aliases={0: 0},
        compiler_params=pltpu.CompilerParams(
            dimension_semantics=("parallel",),
        ),
        cost_estimate=pl.CostEstimate(
            flops=0,
            transcendentals=0,
            bytes_accessed=2 * padded_total * itemsize,
        ),
    )(x2d)

    out_flat = out2d.reshape(padded_total)
    if padded_total != total:
        out_flat = out_flat[:total]
    return out_flat.reshape(orig_shape)


if __name__ == "__main__":
    key = jax.random.PRNGKey(0)
    # Small NCHW input consistent with a conv-style module: batch=2, channels=4, 16x16.
    x = jax.random.normal(key, (2, 4, 16, 16), dtype=jnp.float32)

    # Snapshot to host before donating the device buffer.
    x_host = np.asarray(x)

    fwd = jax.jit(base_model_forward, donate_argnums=0)
    y = jax.block_until_ready(fwd(x))

    # Correctness against the only well-defined semantics (pass-through).
    assert y.shape == x_host.shape and y.dtype == x_host.dtype
    assert np.array_equal(np.asarray(y), x_host)

    print("KERNEL_OK")
</pallas_src>

<mosaic_0001>
module attributes {stable_mosaic.version = 11 : i64} {
  func.func @_copy_kernel(%arg0: i32, %arg1: memref<4x512xf32, #tpu.memory_space<vmem>>, %arg2: memref<4x512xf32, #tpu.memory_space<vmem>>) attributes {dimension_semantics = [#tpu.dimension_semantics<parallel>], iteration_bounds = array<i64: 1>, scalar_prefetch = 0 : i64, scratch_operands = 0 : i64, tpu.core_type = #tpu.core_type<tc>, window_params = [{transform_indices = @transform_0, window_bounds = array<i64: 4, 512>}, {transform_indices = @transform_1, window_bounds = array<i64: 4, 512>}]} {
    %c0 = arith.constant 0 : index
    %c0_0 = arith.constant 0 : index
    %0 = vector.load %arg1[%c0, %c0_0] : memref<4x512xf32, #tpu.memory_space<vmem>>, vector<4x512xf32>
    %c0_1 = arith.constant 0 : index
    %c0_2 = arith.constant 0 : index
    %1 = vector.load %arg2[%c0_1, %c0_2] : memref<4x512xf32, #tpu.memory_space<vmem>>, vector<4x512xf32>
    tpu.vector_store %arg2[%c0_1, %c0_2], %0 {strides = array<i32>} : memref<4x512xf32, #tpu.memory_space<vmem>>, vector<4x512xf32>,
    return
  }
  func.func @transform_0(%arg0: i32) -> (i32, i32) {
    %c0_i32 = arith.constant 0 : i32
    %c0_i32_0 = arith.constant 0 : i32
    return %arg0, %c0_i32 : i32, i32
  }
  func.func @transform_1(%arg0: i32) -> (i32, i32) {
    %c0_i32 = arith.constant 0 : i32
    %c0_i32_0 = arith.constant 0 : i32
    return %arg0, %c0_i32 : i32, i32
  }
}

</mosaic_0001>

<llo_original>
// kernel: base_model_forward.1
$region0: #{base_model_forward.1}
  #allocation0 [shape = 'u32[]', space=smem, size = 0x4, offset = 0x4, fixed_abs, tag = 'smem constant byte address 0x4 - core index']
  #allocation1 [shape = 'u32[144,128]{1,0:T(1,128)}', space=vmem, size = 0x12000, scoped, tag = 'internal scratch']
  %s0 = inlined_call_operand.vmem [shape: f32[4,512], index: 0, kind: input, shape index: {}, may-alias: {0,1}]
  %s1 = inlined_call_operand.vmem [shape: f32[4,512], index: 1, kind: output, shape index: {}, may-alias: {0,1}]
  %s2 = sld [smem:[#allocation0]]
  $region14: #{base_model_forward.1} parent=0
    _
  %s4 = ssub.s32 1, %s2
  %s5 = scalar_select 0, %s4, %s2
  // Predicated region
  $region2: #{base_model_forward.1} parent=0 // pred_check
    _
  $region3: #{base_model_forward.1} parent=0 // pred_check_branch
    %7 = sbr.rel (0) target = $region5
  $region4: #{base_model_forward.1} parent=0 // pred_region
    _
  $region5: #{base_model_forward.1} parent=0 // pred_fallthru
    _
  %v8 = vld [vmem:[%s0] sm:$0xff]
  %v9 = vld [vmem:[%s0 + $0x8] sm:$0xff]
  %10 = vst [vmem:[%s1] sm:$0xff] %v8
  %11 = vst [vmem:[%s1 + $0x8] sm:$0xff] %v9
  // Predicated region
  $region6: #{base_model_forward.1} parent=0 // pred_check
    _
  $region7: #{base_model_forward.1} parent=0 // pred_check_branch
    %13 = sbr.rel (0) target = $region9
  $region8: #{base_model_forward.1} parent=0 // pred_region
    _
  $region9: #{base_model_forward.1} parent=0 // pred_fallthru
    _
  // Predicated region
  $region10: #{base_model_forward.1} parent=0 // pred_check
    _
  $region11: #{base_model_forward.1} parent=0 // pred_check_branch
    %15 = sbr.rel (0) target = $region13
  $region12: #{base_model_forward.1} parent=0 // pred_region
    _
  $region13: #{base_model_forward.1} parent=0 // pred_fallthru
    _

</llo_original>
